<compile_context>
chip_gen: v5e
topology: v5e:2x2
jax: 0.10.0
libtpu: 0.0.40
codegen_flags: <defaults>
</compile_context>

<pallas_src>
import functools
import math

import jax
import jax.numpy as jnp
from jax import lax
from jax.experimental import pallas as pl
from jax.experimental.pallas import tpu as pltpu

DT = 0.1
EPS = 0.01    # TODO(synk): `nonsep_symint` source not provided; role of `eps` unknown -> unused.
OMEGA = 20.0  # w (binding strength)
N_STEPS = 1   # last=True -> only the final state is returned.


def _tao_kernel(qy_ref, xp_ref, w1_ref, w1tu_ref, w2_ref, w2t_ref, bw_ref,
                out_ref, *, D, n_steps):
    # --- hoisted, read once per grid step -----------------------------------
    w1 = w1_ref[...]        # [2D, H]  fused first layer  [w1q; w1p]
    w1tu = w1tu_ref[...]    # [H, 2D]  (dt/2) * [w1p^T | -w1q^T]  (update matmul)
    w2 = w2_ref[...]        # [H, H]
    w2t = w2t_ref[...]      # [H, H]
    b1 = bw_ref[0:1, :]     # [1, H]   added per dot-epilogue (no materialized
    b2 = bw_ref[1:2, :]     #          [bt, H] broadcasts kept live across evals)
    w3 = bw_ref[2:3, :]     # [1, H]   transposed output weight

    c = math.cos(2.0 * OMEGA * DT)
    s = math.sin(2.0 * OMEGA * DT)
    # Lane-wise signed constant used once per step in phi3: [+s]*D ++ [-s]*D.
    lane = lax.broadcasted_iota(jnp.int32, (1, 2 * D), 1)
    ssgn = jnp.where(lane < D, jnp.float32(s), jnp.float32(-s))

    def grad_update(src):
        """(dt/2) * J * gradH(src) -> additive update for the *other* slab.

        H(a, b) = w3 . tanh(W2 tanh(W1 [a;b] + b1) + b2); manual backprop.  The
        half-step scale, the (dH/db, -dH/da) half-swap and its sign are folded
        into w1tu, so this is 4 matmuls + elementwise only.
        """
        h1 = jnp.tanh(jnp.dot(src, w1, preferred_element_type=jnp.float32) + b1)
        h2 = jnp.tanh(jnp.dot(h1, w2, preferred_element_type=jnp.float32) + b2)
        g2 = (1.0 - h2 * h2) * w3
        g1 = jnp.dot(g2, w2t, preferred_element_type=jnp.float32) * (1.0 - h1 * h1)
        return jnp.dot(g1, w1tu, preferred_element_type=jnp.float32)   # [bt, 2D]

    def swap_halves(z):
        # [a | b] -> [b | a]; the only cross-half shuffle left (1 per step).
        return jnp.concatenate([z[:, D:], z[:, :D]], axis=-1)

    def tao_step(qy, xp):
        # phi1(dt/2): flow of H(q, y) -> updates (x, p)
        xp = xp + grad_update(qy)
        # phi2(dt/2): flow of H(x, p) -> updates (q, y)
        qy = qy + grad_update(xp)
        # phi3(dt): omega-binding rotation, computed on the packed slabs.
        mean = 0.5 * (qy + xp)            # [ (q+x)/2 | (y+p)/2 ]
        diff = 0.5 * (qy - xp)            # [ (q-x)/2 | (y-p)/2 ]
        rot = c * diff - ssgn * swap_halves(diff)
        qy = mean + rot
        xp = mean - rot
        # phi2(dt/2)
        qy = qy + grad_update(xp)
        # phi1(dt/2)
        xp = xp + grad_update(qy)
        return qy, xp

    qy = qy_ref[...]
    xp = xp_ref[...]
    if n_steps == 1:
        qy, xp = tao_step(qy, xp)
    else:
        # Multi-step trajectory: state stays resident; unroll=2 gives the LLO
        # scheduler visibility across adjacent (serially-dependent) steps.
        qy, xp = lax.fori_loop(0, n_steps, lambda _, st: tao_step(*st),
                               (qy, xp), unroll=2)

    # Single lane-dense [bt, 4D] store: [q | y | x | p].
    out_ref[...] = jnp.concatenate([qy, xp], axis=-1)


def _pick_batch_tile(B):
    """Batch tiling policy.

    Small B -> one grid step (the ~0.35us per-step overhead dwarfs the compute
    of these tiny tiles, and v5e/v6e have a single TensorCore anyway).
    Large B -> >=2 evenly divisible steps so dimension_semantics=("parallel",)
    shards across both v7x TensorCores; tile capped at 4096 rows so [bt, H]
    activations keep vreg pressure modest.  VMEM capacity is never the limit
    here (tiles are KB-scale even against v7x's 64 MiB).
    """
    if B < 256:
        return B
    for tile in (4096, 2048, 1024, 512, 256, 128):
        if B % tile == 0 and B // tile >= 2:
            return tile
    return B


def nonseparate_hnn_forward(q, p, x, y, params, n_steps=N_STEPS, batch_tile=None):
    """Pallas-accelerated forward pass of nonseparate_hnn (Tao symplectic step(s))."""
    w1q, w1p, b1, w2, b2, w3t = params
    B, D = q.shape

    # State packed to match the sub-flow argument pairing: qy = [q|y], xp = [x|p].
    qy = jnp.concatenate([q, y], axis=-1)                              # [B, 2D]
    xp = jnp.concatenate([x, p], axis=-1)                              # [B, 2D]

    # Wrapper-side weight packing (done once, outside the kernel):
    #  * fused first layer -> one matmul where there were two,
    #  * w1tu folds the half-step, the symplectic swap and its sign into the
    #    backprop matmul (no roll/concat/scale in the kernel),
    #  * biases + output weight consolidated into one [3, H] input.
    w1 = jnp.concatenate([w1q, w1p], axis=0)                           # [2D, H]
    w1tu = (0.5 * DT) * jnp.concatenate([w1p.T, -w1q.T], axis=1)       # [H, 2D]
    w2t = w2.T                                                         # [H, H]
    bw = jnp.concatenate([b1, b2, w3t], axis=0)                        # [3, H]

    if batch_tile is None:
        batch_tile = _pick_batch_tile(B)
    if B % batch_tile != 0:
        batch_tile = B
    grid = (B // batch_tile,)

    state_spec = pl.BlockSpec((batch_tile, 2 * D), lambda i: (i, 0))
    out_spec = pl.BlockSpec((batch_tile, 4 * D), lambda i: (i, 0))

    def full_spec(arr):
        return pl.BlockSpec(arr.shape, lambda i: (0, 0))

    kernel = functools.partial(_tao_kernel, D=D, n_steps=n_steps)
    out = pl.pallas_call(
        kernel,
        out_shape=jax.ShapeDtypeStruct((B, 4 * D), jnp.float32),
        grid=grid,
        in_specs=[state_spec, state_spec]
                 + [full_spec(a) for a in (w1, w1tu, w2, w2t, bw)],
        out_specs=out_spec,
        compiler_params=pltpu.CompilerParams(dimension_semantics=("parallel",)),
    )(qy, xp, w1, w1tu, w2, w2t, bw)

    # out = [q | y | x | p]  ->  return (q, p, x, y)
    return (out[:, :D], out[:, 3 * D:], out[:, 2 * D:3 * D], out[:, D:2 * D])


def _reference_forward(q, p, x, y, params, n_steps=N_STEPS):
    """Pure-JAX f32 reference (original separate-weight formulation)."""
    w1q, w1p, b1, w2, b2, w3t = params

    def grad_H(a, b):
        h1 = jnp.tanh(a @ w1q + b @ w1p + b1)
        h2 = jnp.tanh(h1 @ w2 + b2)
        g2 = (1.0 - h2 * h2) * w3t
        g1 = (g2 @ w2.T) * (1.0 - h1 * h1)
        return g1 @ w1q.T, g1 @ w1p.T

    half = 0.5 * DT
    c = math.cos(2.0 * OMEGA * DT)
    s = math.sin(2.0 * OMEGA * DT)

    def step(q, p, x, y):
        dq, dy = grad_H(q, y)
        p, x = p - half * dq, x + half * dy
        dx, dp = grad_H(x, p)
        q, y = q + half * dp, y - half * dx
        qpx, qmx = 0.5 * (q + x), 0.5 * (q - x)
        ppy, pmy = 0.5 * (p + y), 0.5 * (p - y)
        q = qpx + c * qmx + s * pmy
        pp = ppy - s * qmx + c * pmy
        x = qpx - c * qmx - s * pmy
        y = ppy + s * qmx - c * pmy
        p = pp
        dx, dp = grad_H(x, p)
        q, y = q + half * dp, y - half * dx
        dq, dy = grad_H(q, y)
        p, x = p - half * dq, x + half * dy
        return q, p, x, y

    for _ in range(n_steps):
        q, p, x, y = step(q, p, x, y)
    return q, p, x, y


if __name__ == "__main__":
    B, D, H = 8, 8, 32   # batch, phase-space dim, hidden width of the Hamiltonian net

    key = jax.random.PRNGKey(0)
    kq, kp, kx, ky, k1, k2, k3, k4 = jax.random.split(key, 8)

    q = jax.random.normal(kq, (B, D), jnp.float32)
    p = jax.random.normal(kp, (B, D), jnp.float32)
    x = q + 0.01 * jax.random.normal(kx, (B, D), jnp.float32)   # extended copies
    y = p + 0.01 * jax.random.normal(ky, (B, D), jnp.float32)

    # Deterministic Hamiltonian-net parameters (tanh MLP: 2D -> H -> H -> 1).
    s1 = 1.0 / math.sqrt(2 * D)
    s2 = 1.0 / math.sqrt(H)
    w1q = s1 * jax.random.normal(k1, (D, H), jnp.float32)
    w1p = s1 * jax.random.normal(k2, (D, H), jnp.float32)
    b1 = jnp.zeros((1, H), jnp.float32)
    w2 = s2 * jax.random.normal(k3, (H, H), jnp.float32)
    b2 = jnp.zeros((1, H), jnp.float32)
    w3t = s2 * jax.random.normal(k4, (1, H), jnp.float32)       # transposed output weight
    params = (w1q, w1p, b1, w2, b2, w3t)

    # Single Tao step (module default: last=True).
    ref1 = _reference_forward(q, p, x, y, params, n_steps=1)
    out1 = jax.block_until_ready(
        nonseparate_hnn_forward(q, p, x, y, params, n_steps=1))
    for o, r in zip(out1, ref1):
        assert o.shape == (B, D) and o.dtype == jnp.float32
        assert jnp.allclose(o, r, atol=5e-4, rtol=5e-4)

    # Multi-step trajectory path (in-kernel fori_loop, unroll=2).
    ref3 = _reference_forward(q, p, x, y, params, n_steps=3)
    out3 = jax.block_until_ready(
        nonseparate_hnn_forward(q, p, x, y, params, n_steps=3))
    for o, r in zip(out3, ref3):
        assert o.shape == (B, D) and o.dtype == jnp.float32
        assert jnp.allclose(o, r, atol=2e-3, rtol=2e-3)

    print("KERNEL_OK")
</pallas_src>

<mosaic_0001>
module attributes {stable_mosaic.version = 11 : i64} {
  func.func @_tao_kernel(%arg0: i32, %arg1: memref<8x16xf32, #tpu.memory_space<vmem>>, %arg2: memref<8x16xf32, #tpu.memory_space<vmem>>, %arg3: memref<16x32xf32, #tpu.memory_space<vmem>>, %arg4: memref<32x16xf32, #tpu.memory_space<vmem>>, %arg5: memref<32x32xf32, #tpu.memory_space<vmem>>, %arg6: memref<32x32xf32, #tpu.memory_space<vmem>>, %arg7: memref<3x32xf32, #tpu.memory_space<vmem>>, %arg8: memref<8x32xf32, #tpu.memory_space<vmem>>) attributes {dimension_semantics = [#tpu.dimension_semantics<parallel>], iteration_bounds = array<i64: 1>, scalar_prefetch = 0 : i64, scratch_operands = 0 : i64, tpu.core_type = #tpu.core_type<tc>, window_params = [{transform_indices = @transform_0, window_bounds = array<i64: 8, 16>}, {transform_indices = @transform_1, window_bounds = array<i64: 8, 16>}, {pipeline_mode = #tpu.pipeline_mode<synchronous>, transform_indices = @transform_2, window_bounds = array<i64: 16, 32>}, {pipeline_mode = #tpu.pipeline_mode<synchronous>, transform_indices = @transform_3, window_bounds = array<i64: 32, 16>}, {pipeline_mode = #tpu.pipeline_mode<synchronous>, transform_indices = @transform_4, window_bounds = array<i64: 32, 32>}, {pipeline_mode = #tpu.pipeline_mode<synchronous>, transform_indices = @transform_5, window_bounds = array<i64: 32, 32>}, {pipeline_mode = #tpu.pipeline_mode<synchronous>, transform_indices = @transform_6, window_bounds = array<i64: 3, 32>}, {transform_indices = @transform_7, window_bounds = array<i64: 8, 32>}]} {
    %c0 = arith.constant 0 : index
    %c0_0 = arith.constant 0 : index
    %0 = vector.load %arg3[%c0, %c0_0] : memref<16x32xf32, #tpu.memory_space<vmem>>, vector<16x32xf32>
    %c0_1 = arith.constant 0 : index
    %c0_2 = arith.constant 0 : index
    %1 = vector.load %arg4[%c0_1, %c0_2] : memref<32x16xf32, #tpu.memory_space<vmem>>, vector<32x16xf32>
    %c0_3 = arith.constant 0 : index
    %c0_4 = arith.constant 0 : index
    %2 = vector.load %arg5[%c0_3, %c0_4] : memref<32x32xf32, #tpu.memory_space<vmem>>, vector<32x32xf32>
    %c0_5 = arith.constant 0 : index
    %c0_6 = arith.constant 0 : index
    %3 = vector.load %arg6[%c0_5, %c0_6] : memref<32x32xf32, #tpu.memory_space<vmem>>, vector<32x32xf32>
    %c0_7 = arith.constant 0 : index
    %c0_8 = arith.constant 0 : index
    %4 = vector.load %arg7[%c0_7, %c0_8] : memref<3x32xf32, #tpu.memory_space<vmem>>, vector<1x32xf32>
    %c1 = arith.constant 1 : index
    %c0_9 = arith.constant 0 : index
    %5 = vector.load %arg7[%c1, %c0_9] : memref<3x32xf32, #tpu.memory_space<vmem>>, vector<1x32xf32>
    %c2 = arith.constant 2 : index
    %c0_10 = arith.constant 0 : index
    %6 = vector.load %arg7[%c2, %c0_10] : memref<3x32xf32, #tpu.memory_space<vmem>>, vector<1x32xf32>
    %7 = tpu.iota {dimensions = array<i32: 1>} : vector<1x16xi32>
    %c8_i32 = arith.constant 8 : i32
    %8 = vector.broadcast %c8_i32 : i32 to vector<1x16xi32>
    %9 = arith.cmpi slt, %7, %8 : vector<1x16xi32>
    %cst = arith.constant -0.756802499 : f32
    %cst_11 = arith.constant 0.756802499 : f32
    %10 = vector.broadcast %cst : f32 to vector<1x16xf32>
    %11 = vector.broadcast %cst_11 : f32 to vector<1x16xf32>
    %12 = arith.select %9, %10, %11 : vector<1x16xi1>, vector<1x16xf32>
    %c0_12 = arith.constant 0 : index
    %c0_13 = arith.constant 0 : index
    %13 = vector.load %arg1[%c0_12, %c0_13] : memref<8x16xf32, #tpu.memory_space<vmem>>, vector<8x16xf32>
    %c0_14 = arith.constant 0 : index
    %c0_15 = arith.constant 0 : index
    %14 = vector.load %arg2[%c0_14, %c0_15] : memref<8x16xf32, #tpu.memory_space<vmem>>, vector<8x16xf32>
    %cst_16 = arith.constant dense<0.000000e+00> : vector<8x32xf32>
    %15 = tpu.matmul %13, %0, %cst_16 {dimension_numbers = #tpu.dot_dimension_numbers<[1], [0], [0], [1], [0, 0, 1, 1], [], []>} : vector<8x16xf32>, vector<16x32xf32>, vector<8x32xf32> -> vector<8x32xf32>
    %16 = vector.broadcast %4 : vector<1x32xf32> to vector<8x32xf32>
    %17 = arith.addf %15, %16 : vector<8x32xf32>
    %18 = math.tanh %17 : vector<8x32xf32>
    %cst_17 = arith.constant dense<0.000000e+00> : vector<8x32xf32>
    %19 = tpu.matmul %18, %2, %cst_17 {dimension_numbers = #tpu.dot_dimension_numbers<[1], [0], [0], [1], [0, 0, 1, 1], [], []>} : vector<8x32xf32>, vector<32x32xf32>, vector<8x32xf32> -> vector<8x32xf32>
    %20 = vector.broadcast %5 : vector<1x32xf32> to vector<8x32xf32>
    %21 = arith.addf %19, %20 : vector<8x32xf32>
    %22 = math.tanh %21 : vector<8x32xf32>
    %23 = arith.mulf %22, %22 : vector<8x32xf32>
    %cst_18 = arith.constant 1.000000e+00 : f32
    %24 = vector.broadcast %cst_18 : f32 to vector<8x32xf32>
    %25 = arith.subf %24, %23 : vector<8x32xf32>
    %26 = vector.broadcast %6 : vector<1x32xf32> to vector<8x32xf32>
    %27 = arith.mulf %25, %26 : vector<8x32xf32>
    %cst_19 = arith.constant dense<0.000000e+00> : vector<8x32xf32>
    %28 = tpu.matmul %27, %3, %cst_19 {dimension_numbers = #tpu.dot_dimension_numbers<[1], [0], [0], [1], [0, 0, 1, 1], [], []>} : vector<8x32xf32>, vector<32x32xf32>, vector<8x32xf32> -> vector<8x32xf32>
    %29 = arith.mulf %18, %18 : vector<8x32xf32>
    %cst_20 = arith.constant 1.000000e+00 : f32
    %30 = vector.broadcast %cst_20 : f32 to vector<8x32xf32>
    %31 = arith.subf %30, %29 : vector<8x32xf32>
    %32 = arith.mulf %28, %31 : vector<8x32xf32>
    %cst_21 = arith.constant dense<0.000000e+00> : vector<8x16xf32>
    %33 = tpu.matmul %32, %1, %cst_21 {dimension_numbers = #tpu.dot_dimension_numbers<[1], [0], [0], [1], [0, 0, 1, 1], [], []>} : vector<8x32xf32>, vector<32x16xf32>, vector<8x16xf32> -> vector<8x16xf32>
    %34 = arith.addf %14, %33 : vector<8x16xf32>
    %cst_22 = arith.constant dense<0.000000e+00> : vector<8x32xf32>
    %35 = tpu.matmul %34, %0, %cst_22 {dimension_numbers = #tpu.dot_dimension_numbers<[1], [0], [0], [1], [0, 0, 1, 1], [], []>} : vector<8x16xf32>, vector<16x32xf32>, vector<8x32xf32> -> vector<8x32xf32>
    %36 = vector.broadcast %4 : vector<1x32xf32> to vector<8x32xf32>
    %37 = arith.addf %35, %36 : vector<8x32xf32>
    %38 = math.tanh %37 : vector<8x32xf32>
    %cst_23 = arith.constant dense<0.000000e+00> : vector<8x32xf32>
    %39 = tpu.matmul %38, %2, %cst_23 {dimension_numbers = #tpu.dot_dimension_numbers<[1], [0], [0], [1], [0, 0, 1, 1], [], []>} : vector<8x32xf32>, vector<32x32xf32>, vector<8x32xf32> -> vector<8x32xf32>
    %40 = vector.broadcast %5 : vector<1x32xf32> to vector<8x32xf32>
    %41 = arith.addf %39, %40 : vector<8x32xf32>
    %42 = math.tanh %41 : vector<8x32xf32>
    %43 = arith.mulf %42, %42 : vector<8x32xf32>
    %cst_24 = arith.constant 1.000000e+00 : f32
    %44 = vector.broadcast %cst_24 : f32 to vector<8x32xf32>
    %45 = arith.subf %44, %43 : vector<8x32xf32>
    %46 = vector.broadcast %6 : vector<1x32xf32> to vector<8x32xf32>
    %47 = arith.mulf %45, %46 : vector<8x32xf32>
    %cst_25 = arith.constant dense<0.000000e+00> : vector<8x32xf32>
    %48 = tpu.matmul %47, %3, %cst_25 {dimension_numbers = #tpu.dot_dimension_numbers<[1], [0], [0], [1], [0, 0, 1, 1], [], []>} : vector<8x32xf32>, vector<32x32xf32>, vector<8x32xf32> -> vector<8x32xf32>
    %49 = arith.mulf %38, %38 : vector<8x32xf32>
    %cst_26 = arith.constant 1.000000e+00 : f32
    %50 = vector.broadcast %cst_26 : f32 to vector<8x32xf32>
    %51 = arith.subf %50, %49 : vector<8x32xf32>
    %52 = arith.mulf %48, %51 : vector<8x32xf32>
    %cst_27 = arith.constant dense<0.000000e+00> : vector<8x16xf32>
    %53 = tpu.matmul %52, %1, %cst_27 {dimension_numbers = #tpu.dot_dimension_numbers<[1], [0], [0], [1], [0, 0, 1, 1], [], []>} : vector<8x32xf32>, vector<32x16xf32>, vector<8x16xf32> -> vector<8x16xf32>
    %54 = arith.addf %13, %53 : vector<8x16xf32>
    %55 = arith.addf %54, %34 : vector<8x16xf32>
    %cst_28 = arith.constant 5.000000e-01 : f32
    %56 = vector.broadcast %cst_28 : f32 to vector<8x16xf32>
    %57 = arith.mulf %56, %55 : vector<8x16xf32>
    %58 = arith.subf %54, %34 : vector<8x16xf32>
    %cst_29 = arith.constant 5.000000e-01 : f32
    %59 = vector.broadcast %cst_29 : f32 to vector<8x16xf32>
    %60 = arith.mulf %59, %58 : vector<8x16xf32>
    %cst_30 = arith.constant -0.653643608 : f32
    %61 = vector.broadcast %cst_30 : f32 to vector<8x16xf32>
    %62 = arith.mulf %61, %60 : vector<8x16xf32>
    %63 = vector.extract_strided_slice %60 {offsets = [0, 8], sizes = [8, 8], strides = [1, 1]} : vector<8x16xf32> to vector<8x8xf32>
    %64 = vector.extract_strided_slice %60 {offsets = [0, 0], sizes = [8, 8], strides = [1, 1]} : vector<8x16xf32> to vector<8x8xf32>
    %65 = tpu.concatenate %63, %64 in 1 : vector<8x8xf32>, vector<8x8xf32> -> vector<8x16xf32>
    %66 = vector.broadcast %12 : vector<1x16xf32> to vector<8x16xf32>
    %67 = arith.mulf %66, %65 : vector<8x16xf32>
    %68 = arith.subf %62, %67 : vector<8x16xf32>
    %69 = arith.addf %57, %68 : vector<8x16xf32>
    %70 = arith.subf %57, %68 : vector<8x16xf32>
    %cst_31 = arith.constant dense<0.000000e+00> : vector<8x32xf32>
    %71 = tpu.matmul %70, %0, %cst_31 {dimension_numbers = #tpu.dot_dimension_numbers<[1], [0], [0], [1], [0, 0, 1, 1], [], []>} : vector<8x16xf32>, vector<16x32xf32>, vector<8x32xf32> -> vector<8x32xf32>
    %72 = vector.broadcast %4 : vector<1x32xf32> to vector<8x32xf32>
    %73 = arith.addf %71, %72 : vector<8x32xf32>
    %74 = math.tanh %73 : vector<8x32xf32>
    %cst_32 = arith.constant dense<0.000000e+00> : vector<8x32xf32>
    %75 = tpu.matmul %74, %2, %cst_32 {dimension_numbers = #tpu.dot_dimension_numbers<[1], [0], [0], [1], [0, 0, 1, 1], [], []>} : vector<8x32xf32>, vector<32x32xf32>, vector<8x32xf32> -> vector<8x32xf32>
    %76 = vector.broadcast %5 : vector<1x32xf32> to vector<8x32xf32>
    %77 = arith.addf %75, %76 : vector<8x32xf32>
    %78 = math.tanh %77 : vector<8x32xf32>
    %79 = arith.mulf %78, %78 : vector<8x32xf32>
    %cst_33 = arith.constant 1.000000e+00 : f32
    %80 = vector.broadcast %cst_33 : f32 to vector<8x32xf32>
    %81 = arith.subf %80, %79 : vector<8x32xf32>
    %82 = vector.broadcast %6 : vector<1x32xf32> to vector<8x32xf32>
    %83 = arith.mulf %81, %82 : vector<8x32xf32>
    %cst_34 = arith.constant dense<0.000000e+00> : vector<8x32xf32>
    %84 = tpu.matmul %83, %3, %cst_34 {dimension_numbers = #tpu.dot_dimension_numbers<[1], [0], [0], [1], [0, 0, 1, 1], [], []>} : vector<8x32xf32>, vector<32x32xf32>, vector<8x32xf32> -> vector<8x32xf32>
    %85 = arith.mulf %74, %74 : vector<8x32xf32>
    %cst_35 = arith.constant 1.000000e+00 : f32
    %86 = vector.broadcast %cst_35 : f32 to vector<8x32xf32>
    %87 = arith.subf %86, %85 : vector<8x32xf32>
    %88 = arith.mulf %84, %87 : vector<8x32xf32>
    %cst_36 = arith.constant dense<0.000000e+00> : vector<8x16xf32>
    %89 = tpu.matmul %88, %1, %cst_36 {dimension_numbers = #tpu.dot_dimension_numbers<[1], [0], [0], [1], [0, 0, 1, 1], [], []>} : vector<8x32xf32>, vector<32x16xf32>, vector<8x16xf32> -> vector<8x16xf32>
    %90 = arith.addf %69, %89 : vector<8x16xf32>
    %cst_37 = arith.constant dense<0.000000e+00> : vector<8x32xf32>
    %91 = tpu.matmul %90, %0, %cst_37 {dimension_numbers = #tpu.dot_dimension_numbers<[1], [0], [0], [1], [0, 0, 1, 1], [], []>} : vector<8x16xf32>, vector<16x32xf32>, vector<8x32xf32> -> vector<8x32xf32>
    %92 = vector.broadcast %4 : vector<1x32xf32> to vector<8x32xf32>
    %93 = arith.addf %91, %92 : vector<8x32xf32>
    %94 = math.tanh %93 : vector<8x32xf32>
    %cst_38 = arith.constant dense<0.000000e+00> : vector<8x32xf32>
    %95 = tpu.matmul %94, %2, %cst_38 {dimension_numbers = #tpu.dot_dimension_numbers<[1], [0], [0], [1], [0, 0, 1, 1], [], []>} : vector<8x32xf32>, vector<32x32xf32>, vector<8x32xf32> -> vector<8x32xf32>
    %96 = vector.broadcast %5 : vector<1x32xf32> to vector<8x32xf32>
    %97 = arith.addf %95, %96 : vector<8x32xf32>
    %98 = math.tanh %97 : vector<8x32xf32>
    %99 = arith.mulf %98, %98 : vector<8x32xf32>
    %cst_39 = arith.constant 1.000000e+00 : f32
    %100 = vector.broadcast %cst_39 : f32 to vector<8x32xf32>
    %101 = arith.subf %100, %99 : vector<8x32xf32>
    %102 = vector.broadcast %6 : vector<1x32xf32> to vector<8x32xf32>
    %103 = arith.mulf %101, %102 : vector<8x32xf32>
    %cst_40 = arith.constant dense<0.000000e+00> : vector<8x32xf32>
    %104 = tpu.matmul %103, %3, %cst_40 {dimension_numbers = #tpu.dot_dimension_numbers<[1], [0], [0], [1], [0, 0, 1, 1], [], []>} : vector<8x32xf32>, vector<32x32xf32>, vector<8x32xf32> -> vector<8x32xf32>
    %105 = arith.mulf %94, %94 : vector<8x32xf32>
    %cst_41 = arith.constant 1.000000e+00 : f32
    %106 = vector.broadcast %cst_41 : f32 to vector<8x32xf32>
    %107 = arith.subf %106, %105 : vector<8x32xf32>
    %108 = arith.mulf %104, %107 : vector<8x32xf32>
    %cst_42 = arith.constant dense<0.000000e+00> : vector<8x16xf32>
    %109 = tpu.matmul %108, %1, %cst_42 {dimension_numbers = #tpu.dot_dimension_numbers<[1], [0], [0], [1], [0, 0, 1, 1], [], []>} : vector<8x32xf32>, vector<32x16xf32>, vector<8x16xf32> -> vector<8x16xf32>
    %110 = arith.addf %70, %109 : vector<8x16xf32>
    %111 = tpu.concatenate %90, %110 in 1 : vector<8x16xf32>, vector<8x16xf32> -> vector<8x32xf32>
    %c0_43 = arith.constant 0 : index
    %c0_44 = arith.constant 0 : index
    %112 = vector.load %arg8[%c0_43, %c0_44] : memref<8x32xf32, #tpu.memory_space<vmem>>, vector<8x32xf32>
    tpu.vector_store %arg8[%c0_43, %c0_44], %111 {strides = array<i32>} : memref<8x32xf32, #tpu.memory_space<vmem>>, vector<8x32xf32>,
    return
  }
  func.func @transform_0(%arg0: i32) -> (i32, i32) {
    %c0_i32 = arith.constant 0 : i32
    %c0_i32_0 = arith.constant 0 : i32
    return %arg0, %c0_i32 : i32, i32
  }
  func.func @transform_1(%arg0: i32) -> (i32, i32) {
    %c0_i32 = arith.constant 0 : i32
    %c0_i32_0 = arith.constant 0 : i32
    return %arg0, %c0_i32 : i32, i32
  }
  func.func @transform_2(%arg0: i32) -> (i32, i32) {
    %c0_i32 = arith.constant 0 : i32
    %c0_i32_0 = arith.constant 0 : i32
    %c0_i32_1 = arith.constant 0 : i32
    return %c0_i32, %c0_i32_0 : i32, i32
  }
  func.func @transform_3(%arg0: i32) -> (i32, i32) {
    %c0_i32 = arith.constant 0 : i32
    %c0_i32_0 = arith.constant 0 : i32
    %c0_i32_1 = arith.constant 0 : i32
    return %c0_i32, %c0_i32_0 : i32, i32
  }
  func.func @transform_4(%arg0: i32) -> (i32, i32) {
    %c0_i32 = arith.constant 0 : i32
    %c0_i32_0 = arith.constant 0 : i32
    %c0_i32_1 = arith.constant 0 : i32
    return %c0_i32, %c0_i32_0 : i32, i32
  }
  func.func @transform_5(%arg0: i32) -> (i32, i32) {
    %c0_i32 = arith.constant 0 : i32
    %c0_i32_0 = arith.constant 0 : i32
    %c0_i32_1 = arith.constant 0 : i32
    return %c0_i32, %c0_i32_0 : i32, i32
  }
  func.func @transform_6(%arg0: i32) -> (i32, i32) {
    %c0_i32 = arith.constant 0 : i32
    %c0_i32_0 = arith.constant 0 : i32
    %c0_i32_1 = arith.constant 0 : i32
    return %c0_i32, %c0_i32_0 : i32, i32
  }
  func.func @transform_7(%arg0: i32) -> (i32, i32) {
    %c0_i32 = arith.constant 0 : i32
    %c0_i32_0 = arith.constant 0 : i32
    return %arg0, %c0_i32 : i32, i32
  }
}

</mosaic_0001>

<llo_original>
// kernel: tpu_custom_call.1
$region0: #{tpu_custom_call.1}
  #allocation0 [shape = 'u32[]', space=smem, size = 0x4, offset = 0x4, fixed_abs, tag = 'smem constant byte address 0x4 - core index']
  #allocation1 [shape = 'u32[72,128]{1,0:T(1,128)}', space=vmem, size = 0x9000, scoped, tag = 'internal scratch']
  %s0 = inlined_call_operand.hbm [shape: f32[8,16], index: 0, kind: input, shape index: {}]
  %s1 = inlined_call_operand.hbm [shape: f32[8,16], index: 1, kind: input, shape index: {}]
  %s2 = inlined_call_operand.vmem [shape: f32[16,32], index: 2, kind: input, shape index: {}]
  %s3 = inlined_call_operand.vmem [shape: f32[32,16], index: 3, kind: input, shape index: {}]
  %s4 = inlined_call_operand.vmem [shape: f32[32,32], index: 4, kind: input, shape index: {}]
  %s5 = inlined_call_operand.hbm [shape: f32[32,32], index: 5, kind: input, shape index: {}]
  %s6 = inlined_call_operand.vmem [shape: f32[3,32], index: 6, kind: input, shape index: {}]
  %s7 = inlined_call_operand.hbm [shape: f32[8,32], index: 7, kind: output, shape index: {}]
  %s8 = sld [smem:[#allocation0]]
  $region50: #{tpu_custom_call.1} parent=0
    _
  %s10 = ssub.s32 1, %s8
  %s11 = scalar_select 0, %s10, %s8
  $region1: #{tpu_custom_call.1} parent=0
    #allocation2 [shape = 'u8[4096]{0}', space=vmem, size = 0x1000, scoped, tag = 'input window, operand 0, single buffered']
    #allocation3 [shape = 's32[1]{0}', space=sflag, size = 0x4, scoped, tag = 'scoped memory for tpu_custom_call.1']
    #allocation4 [shape = 's32[1]{0}', space=sflag, size = 0x4, scoped, tag = 'scoped memory for tpu_custom_call.1']
    #allocation5 [shape = 'u8[4096]{0}', space=vmem, size = 0x1000, scoped, tag = 'input window, operand 1, single buffered']
    #allocation6 [shape = 's32[1]{0}', space=sflag, size = 0x4, scoped, tag = 'scoped memory for tpu_custom_call.1']
    #allocation7 [shape = 'u8[16384]{0}', space=vmem, size = 0x4000, scoped, tag = 'input window, operand 5, single buffered']
    #allocation8 [shape = 'u8[4096]{0}', space=vmem, size = 0x1000, scoped, tag = 'output window, operand 0, single buffered']
    %12 = vsyncpa [#allocation3], 0
    %13 = vsyncpa [#allocation6], 0
    %14 = vsyncpa [#allocation4], 0
    // Predicated region
    $region2: #{tpu_custom_call.1} parent=1 // pred_check
      _
    $region3: #{tpu_custom_call.1} parent=1 // pred_check_branch
      %16 = sbr.rel (0) target = $region5
    $region4: #{tpu_custom_call.1} parent=1 // pred_region
      %18 = vsyncadd [#allocation3], 0
      %s20 = sshll.u32 %s0, 4
      %s21 = int_to_ptr.hbm [resolvable:$true] %s20
      %s22 = sshll.u32 [#allocation2], 4
      %s23 = int_to_ptr.vmem [resolvable:$true] %s22
      %25 = dma.hbm_to_vmem [thread:$0]  %s21, 128, %s23, [#allocation3]
    $region5: #{tpu_custom_call.1} parent=1 // pred_fallthru
      _
    // Predicated region
    $region6: #{tpu_custom_call.1} parent=1 // pred_check
      _
    $region7: #{tpu_custom_call.1} parent=1 // pred_check_branch
      %27 = sbr.rel (0) target = $region9
    $region8: #{tpu_custom_call.1} parent=1 // pred_region
      %29 = vsyncadd [#allocation6], 0
      %s31 = sshll.u32 %s1, 4
      %s32 = int_to_ptr.hbm [resolvable:$true] %s31
      %s33 = sshll.u32 [#allocation5], 4
      %s34 = int_to_ptr.vmem [resolvable:$true] %s33
      %36 = dma.hbm_to_vmem [thread:$0]  %s32, 128, %s34, [#allocation6]
    $region9: #{tpu_custom_call.1} parent=1 // pred_fallthru
      _
    // Predicated region
    $region10: #{tpu_custom_call.1} parent=1 // pred_check
      _
    $region11: #{tpu_custom_call.1} parent=1 // pred_check_branch
      %38 = sbr.rel (0) target = $region13
    $region12: #{tpu_custom_call.1} parent=1 // pred_region
      _
    $region13: #{tpu_custom_call.1} parent=1 // pred_fallthru
      _
    // Predicated region
    $region14: #{tpu_custom_call.1} parent=1 // pred_check
      _
    $region15: #{tpu_custom_call.1} parent=1 // pred_check_branch
      %40 = sbr.rel (0) target = $region17
    $region16: #{tpu_custom_call.1} parent=1 // pred_region
      _
    $region17: #{tpu_custom_call.1} parent=1 // pred_fallthru
      _
    // Predicated region
    $region18: #{tpu_custom_call.1} parent=1 // pred_check
      _
    $region19: #{tpu_custom_call.1} parent=1 // pred_check_branch
      %42 = sbr.rel (0) target = $region21
    $region20: #{tpu_custom_call.1} parent=1 // pred_region
      _
    $region21: #{tpu_custom_call.1} parent=1 // pred_fallthru
      _
    // Predicated region
    $region22: #{tpu_custom_call.1} parent=1 // pred_check
      _
    $region23: #{tpu_custom_call.1} parent=1 // pred_check_branch
      %44 = sbr.rel (0) target = $region25
    $region24: #{tpu_custom_call.1} parent=1 // pred_region
      %46 = vsyncadd [#allocation6], 0
      %s47 = sshll.u32 %s5, 4
      %s48 = int_to_ptr.hbm [resolvable:$true] %s47
      %s49 = sshll.u32 [#allocation7], 4
      %s50 = int_to_ptr.vmem [resolvable:$true] %s49
      %55 = dma.hbm_to_vmem [thread:$0]  %s48, 512, %s50, [#allocation6], 128, 128, 8
    $region25: #{tpu_custom_call.1} parent=1 // pred_fallthru
      _
    // Predicated region
    $region26: #{tpu_custom_call.1} parent=1 // pred_check
      _
    $region27: #{tpu_custom_call.1} parent=1 // pred_check_branch
      %57 = sbr.rel (0) target = $region29
    $region28: #{tpu_custom_call.1} parent=1 // pred_region
      _
    $region29: #{tpu_custom_call.1} parent=1 // pred_fallthru
      _
    // Predicated region
    $region30: #{tpu_custom_call.1} parent=1 // pred_check
      _
    $region31: #{tpu_custom_call.1} parent=1 // pred_check_branch
      %59 = sbr.rel (0) target = $region33
    $region32: #{tpu_custom_call.1} parent=1 // pred_region
      %61 = dma.done [#allocation3], 128
    $region33: #{tpu_custom_call.1} parent=1 // pred_fallthru
      _
    // Predicated region
    $region34: #{tpu_custom_call.1} parent=1 // pred_check
      _
    $region35: #{tpu_custom_call.1} parent=1 // pred_check_branch
      %63 = sbr.rel (0) target = $region37
    $region36: #{tpu_custom_call.1} parent=1 // pred_region
      %65 = dma.done [#allocation6], 128
    $region37: #{tpu_custom_call.1} parent=1 // pred_fallthru
      _
    // Predicated region
    $region38: #{tpu_custom_call.1} parent=1 // pred_check
      _
    $region39: #{tpu_custom_call.1} parent=1 // pred_check_branch
      %67 = sbr.rel (0) target = $region41
    $region40: #{tpu_custom_call.1} parent=1 // pred_region
      %69 = dma.done [#allocation6], 512
    $region41: #{tpu_custom_call.1} parent=1 // pred_fallthru
      _
    %v70 = vld [vmem:[%s2] sm:$0xff]
    %v71 = vld [vmem:[%s2 + $0x8] sm:$0xff]
    %v72 = vld [vmem:[%s3] sm:$0xff]
    %v73 = vld [vmem:[%s3 + $0x8] sm:$0xff]
    %v74 = vld [vmem:[%s3 + $0x10] sm:$0xff]
    %v75 = vld [vmem:[%s3 + $0x18] sm:$0xff]
    %v76 = vld [vmem:[%s4] sm:$0xff]
    %v77 = vld [vmem:[%s4 + $0x8] sm:$0xff]
    %v78 = vld [vmem:[%s4 + $0x10] sm:$0xff]
    %v79 = vld [vmem:[%s4 + $0x18] sm:$0xff]
    %v80 = vld [vmem:[#allocation7] sm:$0xff]
    %v81 = vld [vmem:[#allocation7 + $0x8] sm:$0xff]
    %v82 = vld [vmem:[#allocation7 + $0x10] sm:$0xff]
    %v83 = vld [vmem:[#allocation7 + $0x18] sm:$0xff]
    %v84 = vld [vmem:[%s6] sm:$0x1]
    %v85 = vld [vmem:[%s6 + $0x1] sm:$0x1]
    %v86 = vld [vmem:[%s6 + $0x2] sm:$0x1]
    %v87 = vlaneseq
    %v88 = vand.u32 %v87, 127
    %vm89 = vcmp.lt.s32.totalorder %v88, 8
    %v90 = vsel %vm89, -0.7568025, 0.7568025
    %v91 = vld [vmem:[#allocation2] sm:$0xff]
    %v92 = vld [vmem:[#allocation5] sm:$0xff]
    %v93 = vperm.slane %v84, 0
    %vm94 = vcmask 130048
    %v96 = vsel %vm94, %v91, 0
    %98 = vmatpush.msra.mxu0 0.0
    %99 = vmatpush.msra.mxu0 0.0
    %100 = vmatpush.msra.mxu0 0.0
    %101 = vmatpush.msra.mxu0 0.0
    %102 = vmatpush.msra.mxu0 0.0
    %103 = vmatpush.msra.mxu0 0.0
    %104 = vmatpush.msra.mxu0 0.0
    %105 = vmatpush.msra.mxu0 0.0
    %106 = vmatpush.msra.mxu0 0.0
    %107 = vmatpush.msra.mxu0 0.0
    %108 = vmatpush.msra.mxu0 0.0
    %109 = vmatpush.msra.mxu0 0.0
    %110 = vmatpush.msra.mxu0 0.0
    %111 = vmatpush.msra.mxu0 0.0
    %112 = vmatpush.msra.mxu0 %v71
    %113 = vmatpush.msra.mxu0 %v70
    %114 = vmatmul.f32.gmra.mxu0 %v96
    %v115 = vpop.f32.mrf.mxu0
    %v116 = vadd.f32 %v93, %v115
    %117 = vdwg.mxu0
    %v118 = vtanh.pop %v116
    %v119 = vperm.slane %v85, 0
    %vm120 = vcmask 261120
    %v122 = vsel %vm120, %v118, 0
    %124 = vmatpush.msra.mxu0 0.0
    %125 = vmatpush.msra.mxu0 0.0
    %126 = vmatpush.msra.mxu0 0.0
    %127 = vmatpush.msra.mxu0 0.0
    %128 = vmatpush.msra.mxu0 0.0
    %129 = vmatpush.msra.mxu0 0.0
    %130 = vmatpush.msra.mxu0 0.0
    %131 = vmatpush.msra.mxu0 0.0
    %132 = vmatpush.msra.mxu0 0.0
    %133 = vmatpush.msra.mxu0 0.0
    %134 = vmatpush.msra.mxu0 0.0
    %135 = vmatpush.msra.mxu0 0.0
    %136 = vmatpush.msra.mxu0 %v79
    %137 = vmatpush.msra.mxu0 %v78
    %138 = vmatpush.msra.mxu0 %v77
    %139 = vmatpush.msra.mxu0 %v76
    %140 = vmatmul.f32.gmra.mxu0 %v122
    %v141 = vpop.f32.mrf.mxu0
    %v142 = vadd.f32 %v119, %v141
    %143 = vdwg.mxu0
    %v144 = vtanh.pop %v142
    %v145 = vmul.f32 %v144, %v144
    %v146 = vsub.f32 1.0, %v145
    %v147 = vperm.slane %v86, 0
    %v148 = vmul.f32 %v146, %v147
    %v150 = vsel %vm120, %v148, 0
    %152 = vmatpush.msra.mxu0 0.0
    %153 = vmatpush.msra.mxu0 0.0
    %154 = vmatpush.msra.mxu0 0.0
    %155 = vmatpush.msra.mxu0 0.0
    %156 = vmatpush.msra.mxu0 0.0
    %157 = vmatpush.msra.mxu0 0.0
    %158 = vmatpush.msra.mxu0 0.0
    %159 = vmatpush.msra.mxu0 0.0
    %160 = vmatpush.msra.mxu0 0.0
    %161 = vmatpush.msra.mxu0 0.0
    %162 = vmatpush.msra.mxu0 0.0
    %163 = vmatpush.msra.mxu0 0.0
    %164 = vmatpush.msra.mxu0 %v83
    %165 = vmatpush.msra.mxu0 %v82
    %166 = vmatpush.msra.mxu0 %v81
    %167 = vmatpush.msra.mxu0 %v80
    %168 = vmatmul.f32.gmra.mxu0 %v150
    %v169 = vpop.f32.mrf.mxu0
    %v170 = vadd.f32 0.0, %v169
    %171 = vdwg.mxu0
    %v172 = vmul.f32 %v118, %v118
    %v173 = vsub.f32 1.0, %v172
    %v174 = vmul.f32 %v170, %v173
    %v176 = vsel %vm120, %v174, 0
    %178 = vmatpush.msra.mxu0 0.0
    %179 = vmatpush.msra.mxu0 0.0
    %180 = vmatpush.msra.mxu0 0.0
    %181 = vmatpush.msra.mxu0 0.0
    %182 = vmatpush.msra.mxu0 0.0
    %183 = vmatpush.msra.mxu0 0.0
    %184 = vmatpush.msra.mxu0 0.0
    %185 = vmatpush.msra.mxu0 0.0
    %186 = vmatpush.msra.mxu0 0.0
    %187 = vmatpush.msra.mxu0 0.0
    %188 = vmatpush.msra.mxu0 0.0
    %189 = vmatpush.msra.mxu0 0.0
    %190 = vmatpush.msra.mxu0 %v75
    %191 = vmatpush.msra.mxu0 %v74
    %192 = vmatpush.msra.mxu0 %v73
    %193 = vmatpush.msra.mxu0 %v72
    %194 = vmatmul.f32.gmra.mxu0 %v176
    %v195 = vpop.f32.mrf.mxu0
    %v196 = vadd.f32 0.0, %v195
    %197 = vdwg.mxu0
    %v198 = vadd.f32 %v92, %v196
    %v200 = vsel %vm94, %v198, 0
    %202 = vmatpush.msra.mxu0 0.0
    %203 = vmatpush.msra.mxu0 0.0
    %204 = vmatpush.msra.mxu0 0.0
    %205 = vmatpush.msra.mxu0 0.0
    %206 = vmatpush.msra.mxu0 0.0
    %207 = vmatpush.msra.mxu0 0.0
    %208 = vmatpush.msra.mxu0 0.0
    %209 = vmatpush.msra.mxu0 0.0
    %210 = vmatpush.msra.mxu0 0.0
    %211 = vmatpush.msra.mxu0 0.0
    %212 = vmatpush.msra.mxu0 0.0
    %213 = vmatpush.msra.mxu0 0.0
    %214 = vmatpush.msra.mxu0 0.0
    %215 = vmatpush.msra.mxu0 0.0
    %216 = vmatpush.msra.mxu0 %v71
    %217 = vmatpush.msra.mxu0 %v70
    %218 = vmatmul.f32.gmra.mxu0 %v200
    %v219 = vpop.f32.mrf.mxu0
    %v220 = vadd.f32 %v93, %v219
    %221 = vdwg.mxu0
    %v222 = vtanh.pop %v220
    %v224 = vsel %vm120, %v222, 0
    %226 = vmatpush.msra.mxu0 0.0
    %227 = vmatpush.msra.mxu0 0.0
    %228 = vmatpush.msra.mxu0 0.0
    %229 = vmatpush.msra.mxu0 0.0
    %230 = vmatpush.msra.mxu0 0.0
    %231 = vmatpush.msra.mxu0 0.0
    %232 = vmatpush.msra.mxu0 0.0
    %233 = vmatpush.msra.mxu0 0.0
    %234 = vmatpush.msra.mxu0 0.0
    %235 = vmatpush.msra.mxu0 0.0
    %236 = vmatpush.msra.mxu0 0.0
    %237 = vmatpush.msra.mxu0 0.0
    %238 = vmatpush.msra.mxu0 %v79
    %239 = vmatpush.msra.mxu0 %v78
    %240 = vmatpush.msra.mxu0 %v77
    %241 = vmatpush.msra.mxu0 %v76
    %242 = vmatmul.f32.gmra.mxu0 %v224
    %v243 = vpop.f32.mrf.mxu0
    %v244 = vadd.f32 %v119, %v243
    %245 = vdwg.mxu0
    %v246 = vtanh.pop %v244
    %v247 = vmul.f32 %v246, %v246
    %v248 = vsub.f32 1.0, %v247
    %v249 = vmul.f32 %v248, %v147
    %v251 = vsel %vm120, %v249, 0
    %253 = vmatpush.msra.mxu0 0.0
    %254 = vmatpush.msra.mxu0 0.0
    %255 = vmatpush.msra.mxu0 0.0
    %256 = vmatpush.msra.mxu0 0.0
    %257 = vmatpush.msra.mxu0 0.0
    %258 = vmatpush.msra.mxu0 0.0
    %259 = vmatpush.msra.mxu0 0.0
    %260 = vmatpush.msra.mxu0 0.0
    %261 = vmatpush.msra.mxu0 0.0
    %262 = vmatpush.msra.mxu0 0.0
    %263 = vmatpush.msra.mxu0 0.0
    %264 = vmatpush.msra.mxu0 0.0
    %265 = vmatpush.msra.mxu0 %v83
    %266 = vmatpush.msra.mxu0 %v82
    %267 = vmatpush.msra.mxu0 %v81
    %268 = vmatpush.msra.mxu0 %v80
    %269 = vmatmul.f32.gmra.mxu0 %v251
    %v270 = vpop.f32.mrf.mxu0
    %v271 = vadd.f32 0.0, %v270
    %272 = vdwg.mxu0
    %v273 = vmul.f32 %v222, %v222
    %v274 = vsub.f32 1.0, %v273
    %v275 = vmul.f32 %v271, %v274
    %v277 = vsel %vm120, %v275, 0
    %279 = vmatpush.msra.mxu0 0.0
    %280 = vmatpush.msra.mxu0 0.0
    %281 = vmatpush.msra.mxu0 0.0
    %282 = vmatpush.msra.mxu0 0.0
    %283 = vmatpush.msra.mxu0 0.0
    %284 = vmatpush.msra.mxu0 0.0
    %285 = vmatpush.msra.mxu0 0.0
    %286 = vmatpush.msra.mxu0 0.0
    %287 = vmatpush.msra.mxu0 0.0
    %288 = vmatpush.msra.mxu0 0.0
    %289 = vmatpush.msra.mxu0 0.0
    %290 = vmatpush.msra.mxu0 0.0
    %291 = vmatpush.msra.mxu0 %v75
    %292 = vmatpush.msra.mxu0 %v74
    %293 = vmatpush.msra.mxu0 %v73
    %294 = vmatpush.msra.mxu0 %v72
    %295 = vmatmul.f32.gmra.mxu0 %v277
    %v296 = vpop.f32.mrf.mxu0
    %v297 = vadd.f32 0.0, %v296
    %298 = vdwg.mxu0
    %v299 = vadd.f32 %v91, %v297
    %v300 = vadd.f32 %v299, %v198
    %v301 = vmul.f32 %v300, 0.5
    %v302 = vsub.f32 %v299, %v198
    %v303 = vmul.f32 %v302, 0.5
    %v304 = vmul.f32 %v303, -0.6536436
    %306 = vrot.lane.b32.xlu0 %v303, 120
    %v307 = vpop.permute.xlu0 %306
    %309 = vrot.lane.b32.xlu0 %v303, 8
    %v310 = vpop.permute.xlu0 %309
    %vm312 = vcmask 64512
    %v313 = vsel %vm312, %v307, %v310
    %v314 = vmul.f32 %v90, %v313
    %v315 = vsub.f32 %v304, %v314
    %v316 = vadd.f32 %v301, %v315
    %v317 = vsub.f32 %v301, %v315
    %v319 = vsel %vm94, %v317, 0
    %321 = vmatpush.msra.mxu0 0.0
    %322 = vmatpush.msra.mxu0 0.0
    %323 = vmatpush.msra.mxu0 0.0
    %324 = vmatpush.msra.mxu0 0.0
    %325 = vmatpush.msra.mxu0 0.0
    %326 = vmatpush.msra.mxu0 0.0
    %327 = vmatpush.msra.mxu0 0.0
    %328 = vmatpush.msra.mxu0 0.0
    %329 = vmatpush.msra.mxu0 0.0
    %330 = vmatpush.msra.mxu0 0.0
    %331 = vmatpush.msra.mxu0 0.0
    %332 = vmatpush.msra.mxu0 0.0
    %333 = vmatpush.msra.mxu0 0.0
    %334 = vmatpush.msra.mxu0 0.0
    %335 = vmatpush.msra.mxu0 %v71
    %336 = vmatpush.msra.mxu0 %v70
    %337 = vmatmul.f32.gmra.mxu0 %v319
    %v338 = vpop.f32.mrf.mxu0
    %v339 = vadd.f32 %v93, %v338
    %340 = vdwg.mxu0
    %v341 = vtanh.pop %v339
    %v343 = vsel %vm120, %v341, 0
    %345 = vmatpush.msra.mxu0 0.0
    %346 = vmatpush.msra.mxu0 0.0
    %347 = vmatpush.msra.mxu0 0.0
    %348 = vmatpush.msra.mxu0 0.0
    %349 = vmatpush.msra.mxu0 0.0
    %350 = vmatpush.msra.mxu0 0.0
    %351 = vmatpush.msra.mxu0 0.0
    %352 = vmatpush.msra.mxu0 0.0
    %353 = vmatpush.msra.mxu0 0.0
    %354 = vmatpush.msra.mxu0 0.0
    %355 = vmatpush.msra.mxu0 0.0
    %356 = vmatpush.msra.mxu0 0.0
    %357 = vmatpush.msra.mxu0 %v79
    %358 = vmatpush.msra.mxu0 %v78
    %359 = vmatpush.msra.mxu0 %v77
    %360 = vmatpush.msra.mxu0 %v76
    %361 = vmatmul.f32.gmra.mxu0 %v343
    %v362 = vpop.f32.mrf.mxu0
    %v363 = vadd.f32 %v119, %v362
    %364 = vdwg.mxu0
    %v365 = vtanh.pop %v363
    %v366 = vmul.f32 %v365, %v365
    %v367 = vsub.f32 1.0, %v366
    %v368 = vmul.f32 %v367, %v147
    %v370 = vsel %vm120, %v368, 0
    %372 = vmatpush.msra.mxu0 0.0
    %373 = vmatpush.msra.mxu0 0.0
    %374 = vmatpush.msra.mxu0 0.0
    %375 = vmatpush.msra.mxu0 0.0
    %376 = vmatpush.msra.mxu0 0.0
    %377 = vmatpush.msra.mxu0 0.0
    %378 = vmatpush.msra.mxu0 0.0
    %379 = vmatpush.msra.mxu0 0.0
    %380 = vmatpush.msra.mxu0 0.0
    %381 = vmatpush.msra.mxu0 0.0
    %382 = vmatpush.msra.mxu0 0.0
    %383 = vmatpush.msra.mxu0 0.0
    %384 = vmatpush.msra.mxu0 %v83
    %385 = vmatpush.msra.mxu0 %v82
    %386 = vmatpush.msra.mxu0 %v81
    %387 = vmatpush.msra.mxu0 %v80
    %388 = vmatmul.f32.gmra.mxu0 %v370
    %v389 = vpop.f32.mrf.mxu0
    %v390 = vadd.f32 0.0, %v389
    %391 = vdwg.mxu0
    %v392 = vmul.f32 %v341, %v341
    %v393 = vsub.f32 1.0, %v392
    %v394 = vmul.f32 %v390, %v393
    %v396 = vsel %vm120, %v394, 0
    %398 = vmatpush.msra.mxu0 0.0
    %399 = vmatpush.msra.mxu0 0.0
    %400 = vmatpush.msra.mxu0 0.0
    %401 = vmatpush.msra.mxu0 0.0
    %402 = vmatpush.msra.mxu0 0.0
    %403 = vmatpush.msra.mxu0 0.0
    %404 = vmatpush.msra.mxu0 0.0
    %405 = vmatpush.msra.mxu0 0.0
    %406 = vmatpush.msra.mxu0 0.0
    %407 = vmatpush.msra.mxu0 0.0
    %408 = vmatpush.msra.mxu0 0.0
    %409 = vmatpush.msra.mxu0 0.0
    %410 = vmatpush.msra.mxu0 %v75
    %411 = vmatpush.msra.mxu0 %v74
    %412 = vmatpush.msra.mxu0 %v73
    %413 = vmatpush.msra.mxu0 %v72
    %414 = vmatmul.f32.gmra.mxu0 %v396
    %v415 = vpop.f32.mrf.mxu0
    %v416 = vadd.f32 0.0, %v415
    %417 = vdwg.mxu0
    %v418 = vadd.f32 %v316, %v416
    %v420 = vsel %vm94, %v418, 0
    %422 = vmatpush.msra.mxu0 0.0
    %423 = vmatpush.msra.mxu0 0.0
    %424 = vmatpush.msra.mxu0 0.0
    %425 = vmatpush.msra.mxu0 0.0
    %426 = vmatpush.msra.mxu0 0.0
    %427 = vmatpush.msra.mxu0 0.0
    %428 = vmatpush.msra.mxu0 0.0
    %429 = vmatpush.msra.mxu0 0.0
    %430 = vmatpush.msra.mxu0 0.0
    %431 = vmatpush.msra.mxu0 0.0
    %432 = vmatpush.msra.mxu0 0.0
    %433 = vmatpush.msra.mxu0 0.0
    %434 = vmatpush.msra.mxu0 0.0
    %435 = vmatpush.msra.mxu0 0.0
    %436 = vmatpush.msra.mxu0 %v71
    %437 = vmatpush.msra.mxu0 %v70
    %438 = vmatmul.f32.gmra.mxu0 %v420
    %v439 = vpop.f32.mrf.mxu0
    %v440 = vadd.f32 %v93, %v439
    %441 = vdwg.mxu0
    %v442 = vtanh.pop %v440
    %v444 = vsel %vm120, %v442, 0
    %446 = vmatpush.msra.mxu0 0.0
    %447 = vmatpush.msra.mxu0 0.0
    %448 = vmatpush.msra.mxu0 0.0
    %449 = vmatpush.msra.mxu0 0.0
    %450 = vmatpush.msra.mxu0 0.0
    %451 = vmatpush.msra.mxu0 0.0
    %452 = vmatpush.msra.mxu0 0.0
    %453 = vmatpush.msra.mxu0 0.0
    %454 = vmatpush.msra.mxu0 0.0
    %455 = vmatpush.msra.mxu0 0.0
    %456 = vmatpush.msra.mxu0 0.0
    %457 = vmatpush.msra.mxu0 0.0
    %458 = vmatpush.msra.mxu0 %v79
    %459 = vmatpush.msra.mxu0 %v78
    %460 = vmatpush.msra.mxu0 %v77
    %461 = vmatpush.msra.mxu0 %v76
    %462 = vmatmul.f32.gmra.mxu0 %v444
    %v463 = vpop.f32.mrf.mxu0
    %v464 = vadd.f32 %v119, %v463
    %465 = vdwg.mxu0
    %v466 = vtanh.pop %v464
    %v467 = vmul.f32 %v466, %v466
    %v468 = vsub.f32 1.0, %v467
    %v469 = vmul.f32 %v468, %v147
    %v471 = vsel %vm120, %v469, 0
    %473 = vmatpush.msra.mxu0 0.0
    %474 = vmatpush.msra.mxu0 0.0
    %475 = vmatpush.msra.mxu0 0.0
    %476 = vmatpush.msra.mxu0 0.0
    %477 = vmatpush.msra.mxu0 0.0
    %478 = vmatpush.msra.mxu0 0.0
    %479 = vmatpush.msra.mxu0 0.0
    %480 = vmatpush.msra.mxu0 0.0
    %481 = vmatpush.msra.mxu0 0.0
    %482 = vmatpush.msra.mxu0 0.0
    %483 = vmatpush.msra.mxu0 0.0
    %484 = vmatpush.msra.mxu0 0.0
    %485 = vmatpush.msra.mxu0 %v83
    %486 = vmatpush.msra.mxu0 %v82
    %487 = vmatpush.msra.mxu0 %v81
    %488 = vmatpush.msra.mxu0 %v80
    %489 = vmatmul.f32.gmra.mxu0 %v471
    %v490 = vpop.f32.mrf.mxu0
    %v491 = vadd.f32 0.0, %v490
    %492 = vdwg.mxu0
    %v493 = vmul.f32 %v442, %v442
    %v494 = vsub.f32 1.0, %v493
    %v495 = vmul.f32 %v491, %v494
    %v497 = vsel %vm120, %v495, 0
    %499 = vmatpush.msra.mxu0 0.0
    %500 = vmatpush.msra.mxu0 0.0
    %501 = vmatpush.msra.mxu0 0.0
    %502 = vmatpush.msra.mxu0 0.0
    %503 = vmatpush.msra.mxu0 0.0
    %504 = vmatpush.msra.mxu0 0.0
    %505 = vmatpush.msra.mxu0 0.0
    %506 = vmatpush.msra.mxu0 0.0
    %507 = vmatpush.msra.mxu0 0.0
    %508 = vmatpush.msra.mxu0 0.0
    %509 = vmatpush.msra.mxu0 0.0
    %510 = vmatpush.msra.mxu0 0.0
    %511 = vmatpush.msra.mxu0 %v75
    %512 = vmatpush.msra.mxu0 %v74
    %513 = vmatpush.msra.mxu0 %v73
    %514 = vmatpush.msra.mxu0 %v72
    %515 = vmatmul.f32.gmra.mxu0 %v497
    %v516 = vpop.f32.mrf.mxu0
    %v517 = vadd.f32 0.0, %v516
    %518 = vdwg.mxu0
    %v519 = vadd.f32 %v317, %v517
    %521 = vrot.lane.b32.xlu0 %v519, 16
    %v522 = vpop.permute.xlu0 %521
    %v524 = vsel %vm94, %v418, %v522
    %525 = vst.msk [vmem:[#allocation8] sm:$0xff] %vm120, %v524
    // Predicated region
    $region42: #{tpu_custom_call.1} parent=1 // pred_check
      _
    $region43: #{tpu_custom_call.1} parent=1 // pred_check_branch
      %527 = sbr.rel (0) target = $region45
    $region44: #{tpu_custom_call.1} parent=1 // pred_region
      %529 = vsyncadd [#allocation4], 0
      %s531 = sshll.u32 [#allocation8], 4
      %s532 = int_to_ptr.vmem [resolvable:$true] %s531
      %s533 = sshll.u32 %s7, 4
      %s534 = int_to_ptr.hbm [resolvable:$true] %s533
      %536 = dma.vmem_to_hbm [thread:$0]  %s532, 128, %s534, [#allocation4]
    $region45: #{tpu_custom_call.1} parent=1 // pred_fallthru
      _
    // Predicated region
    $region46: #{tpu_custom_call.1} parent=1 // pred_check
      _
    $region47: #{tpu_custom_call.1} parent=1 // pred_check_branch
      %538 = sbr.rel (0) target = $region49
    $region48: #{tpu_custom_call.1} parent=1 // pred_region
      %540 = dma.done [#allocation4], 128
    $region49: #{tpu_custom_call.1} parent=1 // pred_fallthru
      _
    %541 = vsyncpa [#allocation3], 1
    %542 = vsyncpa [#allocation6], 1
    %543 = vsyncpa [#allocation4], 1

</llo_original>
